<compile_context>
chip_gen: v5e
topology: v5e:2x2
jax: 0.10.0
libtpu: 0.0.40
codegen_flags: <defaults>
</compile_context>

<pallas_src>
import functools

import jax
import jax.numpy as jnp
import numpy as np
from jax import lax
from jax.experimental import pallas as pl
from jax.experimental.pallas import tpu as pltpu


# ---------------------------------------------------------------------------
# Helpers
# ---------------------------------------------------------------------------
def _round_up(x, m):
    return ((x + m - 1) // m) * m


def _pick_tile(dim, target, unit):
    """Largest multiple of `unit` that divides `dim` and is <= target.
    Falls back to the full dim (full-dim blocks are always legal)."""
    if dim <= target:
        return dim
    t = (target // unit) * unit
    while t >= unit:
        if dim % t == 0:
            return t
        t -= unit
    return dim


def _heads_per_group(num_heads, head_dim):
    """Group heads so one group's output spans 128 lanes when possible
    (head pairs for head_dim=64) -> aligned, unmasked stores."""
    hg = 128 // head_dim if (head_dim <= 128 and 128 % head_dim == 0) else 1
    hg = max(1, min(hg, num_heads))
    while num_heads % hg:
        hg -= 1
    return hg


def _vmem_limit_bytes():
    """~75% of physical VMEM, capped at 96 MiB (96 MiB on v5e/v6e, ~48 on v7x)."""
    try:
        cap = pltpu.get_tpu_info().vmem_capacity_bytes
    except Exception:
        cap = 64 * 1024 * 1024
    return int(min(96 * 1024 * 1024, cap * 3 // 4))


# ---------------------------------------------------------------------------
# Tiled projection kernels:  y = x @ w.T (+ b)
#   x tile (tm, tk), w tile (tn, tk) in PyTorch (out, in) layout.
#   f32 accumulator stays resident in VMEM across the K grid axis.
# ---------------------------------------------------------------------------
def _matmul_kernel(x_ref, w_ref, o_ref, acc_ref):
    @pl.when(pl.program_id(2) == 0)
    def _():
        acc_ref[...] = jnp.zeros_like(acc_ref)

    acc_ref[...] += lax.dot_general(
        x_ref[...], w_ref[...],
        dimension_numbers=(((1,), (1,)), ((), ())),
        preferred_element_type=jnp.float32)

    @pl.when(pl.program_id(2) == pl.num_programs(2) - 1)
    def _():
        o_ref[...] = acc_ref[...].astype(o_ref.dtype)


def _matmul_bias_kernel(x_ref, w_ref, b_ref, o_ref, acc_ref):
    @pl.when(pl.program_id(2) == 0)
    def _():
        acc_ref[...] = jnp.zeros_like(acc_ref)

    acc_ref[...] += lax.dot_general(
        x_ref[...], w_ref[...],
        dimension_numbers=(((1,), (1,)), ((), ())),
        preferred_element_type=jnp.float32)

    @pl.when(pl.program_id(2) == pl.num_programs(2) - 1)
    def _():
        o_ref[...] = (acc_ref[...] + b_ref[...]).astype(o_ref.dtype)


def _linear(x2d, w, b, *, out_dtype, tm, tn, tk):
    """y = x2d @ w.T (+ b); x2d: (M, K), w: (Nout, K) PyTorch layout."""
    M, K = x2d.shape
    Nout = w.shape[0]
    tm = _pick_tile(M, tm, 8)
    tn = _pick_tile(Nout, tn, 128)
    tk = _pick_tile(K, tk, 128)
    grid = (M // tm, Nout // tn, K // tk)
    itemsize = jnp.dtype(x2d.dtype).itemsize

    x_spec = pl.BlockSpec((tm, tk), lambda i, j, k: (i, k))
    w_spec = pl.BlockSpec((tn, tk), lambda i, j, k: (j, k))
    o_spec = pl.BlockSpec((tm, tn), lambda i, j, k: (i, j))
    params = pltpu.CompilerParams(
        dimension_semantics=("parallel", "parallel", "arbitrary"),
        vmem_limit_bytes=_vmem_limit_bytes())
    scratch = [pltpu.VMEM((tm, tn), jnp.float32)]
    cost = pl.CostEstimate(
        flops=2 * M * Nout * K, transcendentals=0,
        bytes_accessed=(M * K + Nout * K + M * Nout) * itemsize)

    if b is None:
        return pl.pallas_call(
            _matmul_kernel, grid=grid,
            in_specs=[x_spec, w_spec], out_specs=o_spec,
            out_shape=jax.ShapeDtypeStruct((M, Nout), out_dtype),
            scratch_shapes=scratch, compiler_params=params,
            cost_estimate=cost,
        )(x2d, w)

    b2d = jnp.asarray(b, jnp.float32).reshape(1, Nout)
    b_spec = pl.BlockSpec((1, tn), lambda i, j, k: (0, j))
    return pl.pallas_call(
        _matmul_bias_kernel, grid=grid,
        in_specs=[x_spec, w_spec, b_spec], out_specs=o_spec,
        out_shape=jax.ShapeDtypeStruct((M, Nout), out_dtype),
        scratch_shapes=scratch, compiler_params=params,
        cost_estimate=cost,
    )(x2d, w, b2d)


# ---------------------------------------------------------------------------
# Attention kernel: one (batch, query-block) grid step.
#   qkv_ref: (n_pad, 3C) packed [q|k|v] slab for this batch, resident across
#            the query axis (q already pre-scaled via the folded weight).
#   o_ref  : (tq, C) lane-dense output block (head h at cols [h*hd,(h+1)*hd)),
#            i.e. exactly the (attn @ v).transpose(1,2).reshape layout.
# ---------------------------------------------------------------------------
def _attention_kernel(qkv_ref, o_ref, *, num_heads, head_dim, heads_per_group,
                      n_actual, n_pad, tq, softmax_dtype):
    C = num_heads * head_dim
    q_row = pl.multiple_of(pl.program_id(1) * tq, 8)

    # Key-padding mask bias, built once (only when padding exists).
    if n_pad != n_actual:
        key_idx = lax.broadcasted_iota(jnp.int32, (1, n_pad), 1)
        mask_bias = jnp.where(key_idx < n_actual, 0.0, -1e30).astype(jnp.float32)
    else:
        mask_bias = None

    group_w = heads_per_group * head_dim
    for g in range(num_heads // heads_per_group):
        outs = []
        for j in range(heads_per_group):
            h = g * heads_per_group + j
            q = qkv_ref[pl.ds(q_row, tq), pl.ds(h * head_dim, head_dim)]
            k = qkv_ref[:, pl.ds(C + h * head_dim, head_dim)]
            v = qkv_ref[:, pl.ds(2 * C + h * head_dim, head_dim)]
            # q . k^T contracting head_dim directly (no in-kernel transpose);
            # the 1/sqrt(head_dim) scale is folded into the QKV weight.
            s = lax.dot_general(q, k, (((1,), (1,)), ((), ())),
                                preferred_element_type=jnp.float32)
            if mask_bias is not None:
                s = s + mask_bias
            # Softmax (max-shifted); exp optionally in bf16 on v6e/v7x,
            # accumulation / normalization in f32, recip on the EUP.
            s = s - jnp.max(s, axis=-1, keepdims=True)
            p = jnp.exp(s.astype(softmax_dtype)).astype(jnp.float32)
            inv = pl.reciprocal(jnp.sum(p, axis=-1, keepdims=True), approx=True)
            p = (p * inv).astype(v.dtype)
            outs.append(jnp.dot(p, v, preferred_element_type=jnp.float32))
        block = outs[0] if heads_per_group == 1 else jnp.concatenate(outs, axis=-1)
        # 128-lane-aligned group store; kills head live ranges per group.
        o_ref[:, pl.ds(g * group_w, group_w)] = block.astype(o_ref.dtype)


# ---------------------------------------------------------------------------
# Wrapper
# ---------------------------------------------------------------------------
def multi_head_attention(x, w_qkv, w_proj, b_proj, num_heads, *,
                         b_qkv=None, compute_dtype=jnp.float32,
                         softmax_dtype=jnp.float32,
                         tm=512, tn=512, tk=512, tq_target=256):
    """Forward pass of the DINOv2 MultiHeadAttention module.

    x:      (B, N, C) float32
    w_qkv:  (3C, C)   float32   (PyTorch nn.Linear weight)
    w_proj: (C, C)    float32
    b_proj: (C,)      float32
    b_qkv:  optional (3C,) bias (qkv_bias=True checkpoints)
    compute_dtype: f32 (default) or bf16 MXU operands (f32 accumulation).
    softmax_dtype: dtype used for exp (bf16 useful on v6e/v7x; keep f32 on v5e).
    """
    B, N, C = x.shape
    head_dim = C // num_heads
    scale = head_dim ** (-0.5)
    itemsize = jnp.dtype(compute_dtype).itemsize

    # Pad sequence to a multiple of 8 so all blocks are (8,128)-legal and the
    # grid stays tiled for real DINOv2 lengths (257, 1370, ...).
    n_pad = _round_up(N, 8)
    tq = _pick_tile(n_pad, tq_target, 8)
    x_p = x if n_pad == N else jnp.pad(x, ((0, 0), (0, n_pad - N), (0, 0)))
    x2d = x_p.reshape(B * n_pad, C).astype(compute_dtype)

    # Fold the softmax scale into the q rows of the QKV weight/bias:
    # removes all per-score multiplies from the attention kernel.
    w_qkv_s = jnp.concatenate([w_qkv[:C] * scale, w_qkv[C:]], axis=0)
    b_qkv_s = None if b_qkv is None else jnp.concatenate(
        [b_qkv[:C] * scale, b_qkv[C:]], axis=0)

    # ---- 1) QKV projection, kept packed as (B*n_pad, 3C) ---------------------
    qkv = _linear(x2d, w_qkv_s.astype(compute_dtype), b_qkv_s,
                  out_dtype=compute_dtype, tm=tm, tn=tn, tk=tk)
    qkv = qkv.reshape(B, n_pad, 3 * C)

    # ---- 2) Attention: grid (batch, query-block) -----------------------------
    hg = _heads_per_group(num_heads, head_dim)
    grid = (B, n_pad // tq)
    attn_out = pl.pallas_call(
        functools.partial(_attention_kernel, num_heads=num_heads,
                          head_dim=head_dim, heads_per_group=hg,
                          n_actual=N, n_pad=n_pad, tq=tq,
                          softmax_dtype=softmax_dtype),
        grid=grid,
        in_specs=[pl.BlockSpec((None, n_pad, 3 * C), lambda b, qi: (b, 0, 0))],
        out_specs=pl.BlockSpec((None, tq, C), lambda b, qi: (b, qi, 0)),
        out_shape=jax.ShapeDtypeStruct((B, n_pad, C), compute_dtype),
        compiler_params=pltpu.CompilerParams(
            dimension_semantics=("parallel", "parallel"),
            vmem_limit_bytes=_vmem_limit_bytes()),
        cost_estimate=pl.CostEstimate(
            flops=4 * B * num_heads * n_pad * n_pad * head_dim,
            transcendentals=B * num_heads * n_pad * n_pad,
            bytes_accessed=(B * n_pad * 3 * C + B * n_pad * C) * itemsize),
    )(qkv)

    # ---- 3) Output projection with bias (f32 result) --------------------------
    out = _linear(attn_out.reshape(B * n_pad, C), w_proj.astype(compute_dtype),
                  b_proj, out_dtype=jnp.float32, tm=tm, tn=tn, tk=tk)
    out = out.reshape(B, n_pad, C)

    # Dropout(p=0.0) is the identity -> nothing to do.
    return out if n_pad == N else out[:, :N, :]


# ---------------------------------------------------------------------------
# Pure-JAX reference (for correctness check)
# ---------------------------------------------------------------------------
def _reference(x, w_qkv, w_proj, b_proj, num_heads, b_qkv=None):
    B, N, C = x.shape
    hd = C // num_heads
    scale = hd ** (-0.5)
    qkv = x @ w_qkv.T
    if b_qkv is not None:
        qkv = qkv + b_qkv
    qkv = qkv.reshape(B, N, 3, num_heads, hd).transpose(2, 0, 3, 1, 4)
    q, k, v = qkv[0], qkv[1], qkv[2]
    attn = jnp.einsum("bhqd,bhkd->bhqk", q, k) * scale
    attn = jax.nn.softmax(attn, axis=-1)
    o = jnp.einsum("bhqk,bhkd->bhqd", attn, v)
    o = o.transpose(0, 2, 1, 3).reshape(B, N, C)
    return o @ w_proj.T + b_proj


# ---------------------------------------------------------------------------
if __name__ == "__main__":
    B, N, C, H = 2, 8, 32, 8

    key = jax.random.PRNGKey(0)
    kx, kqkv, kproj, kb = jax.random.split(key, 4)
    x = jax.random.normal(kx, (B, N, C), dtype=jnp.float32)
    w_qkv = jax.random.normal(kqkv, (3 * C, C), dtype=jnp.float32) * 0.05
    w_proj = jax.random.normal(kproj, (C, C), dtype=jnp.float32) * 0.05
    b_proj = jax.random.normal(kb, (C,), dtype=jnp.float32) * 0.05

    ref = _reference(x, w_qkv, w_proj, b_proj, H)

    # f32 compute path (tolerance relaxed slightly for the EUP approx reciprocal).
    out = multi_head_attention(x, w_qkv, w_proj, b_proj, H)
    out = jax.block_until_ready(out)
    np.testing.assert_allclose(np.asarray(out), np.asarray(ref),
                               rtol=2e-2, atol=2e-2)

    # bf16 MXU path (f32 accumulation + f32 softmax), loose check.
    out_bf16 = multi_head_attention(x, w_qkv, w_proj, b_proj, H,
                                    compute_dtype=jnp.bfloat16)
    out_bf16 = jax.block_until_ready(out_bf16)
    np.testing.assert_allclose(np.asarray(out_bf16), np.asarray(ref),
                               rtol=1e-1, atol=1e-1)

    # Non-multiple-of-8 sequence length exercises padding + key masking.
    N_odd = 9
    x_odd = jax.random.normal(kx, (B, N_odd, C), dtype=jnp.float32)
    ref_odd = _reference(x_odd, w_qkv, w_proj, b_proj, H)
    out_odd = multi_head_attention(x_odd, w_qkv, w_proj, b_proj, H)
    out_odd = jax.block_until_ready(out_odd)
    np.testing.assert_allclose(np.asarray(out_odd), np.asarray(ref_odd),
                               rtol=2e-2, atol=2e-2)

    print("KERNEL_OK")
</pallas_src>

<mosaic_0001>
module attributes {stable_mosaic.version = 11 : i64} {
  func.func @_matmul_kernel(%arg0: i32, %arg1: i32, %arg2: i32, %arg3: memref<16x32xf32, #tpu.memory_space<vmem>>, %arg4: memref<96x32xf32, #tpu.memory_space<vmem>>, %arg5: memref<16x96xf32, #tpu.memory_space<vmem>>, %arg6: memref<16x96xf32, #tpu.memory_space<vmem>>) attributes {dimension_semantics = [#tpu.dimension_semantics<parallel>, #tpu.dimension_semantics<parallel>, #tpu.dimension_semantics<arbitrary>], iteration_bounds = array<i64: 1, 1, 1>, scalar_prefetch = 0 : i64, scratch_operands = 1 : i64, tpu.core_type = #tpu.core_type<tc>, window_params = [{transform_indices = @transform_0, window_bounds = array<i64: 16, 32>}, {transform_indices = @transform_1, window_bounds = array<i64: 96, 32>}, {transform_indices = @transform_2, window_bounds = array<i64: 16, 96>}]} {
    %c0_i32 = arith.constant 0 : i32
    %0 = arith.cmpi eq, %arg2, %c0_i32 : i32
    %1 = arith.extui %0 : i1 to i32
    %c0_i32_0 = arith.constant 0 : i32
    %2 = arith.cmpi ne, %1, %c0_i32_0 : i32
    scf.if %2 {
      %cst_10 = arith.constant 0.000000e+00 : f32
      %12 = vector.broadcast %cst_10 : f32 to vector<16x96xf32>
      %c0_11 = arith.constant 0 : index
      %c0_12 = arith.constant 0 : index
      %13 = vector.load %arg6[%c0_11, %c0_12] : memref<16x96xf32, #tpu.memory_space<vmem>>, vector<16x96xf32>
      tpu.vector_store %arg6[%c0_11, %c0_12], %12 {strides = array<i32>} : memref<16x96xf32, #tpu.memory_space<vmem>>, vector<16x96xf32>,
    } else {
    }
    %c0 = arith.constant 0 : index
    %c0_1 = arith.constant 0 : index
    %3 = vector.load %arg6[%c0, %c0_1] : memref<16x96xf32, #tpu.memory_space<vmem>>, vector<16x96xf32>
    %c0_2 = arith.constant 0 : index
    %c0_3 = arith.constant 0 : index
    %4 = vector.load %arg3[%c0_2, %c0_3] : memref<16x32xf32, #tpu.memory_space<vmem>>, vector<16x32xf32>
    %c0_4 = arith.constant 0 : index
    %c0_5 = arith.constant 0 : index
    %5 = vector.load %arg4[%c0_4, %c0_5] : memref<96x32xf32, #tpu.memory_space<vmem>>, vector<96x32xf32>
    %cst = arith.constant dense<0.000000e+00> : vector<16x96xf32>
    %6 = tpu.matmul %4, %5, %cst {dimension_numbers = #tpu.dot_dimension_numbers<[1], [1], [0], [0], [0, 0, 1, 0], [], []>} : vector<16x32xf32>, vector<96x32xf32>, vector<16x96xf32> -> vector<16x96xf32>
    %7 = arith.addf %3, %6 : vector<16x96xf32>
    %c0_6 = arith.constant 0 : index
    %c0_7 = arith.constant 0 : index
    %8 = vector.load %arg6[%c0_6, %c0_7] : memref<16x96xf32, #tpu.memory_space<vmem>>, vector<16x96xf32>
    tpu.vector_store %arg6[%c0_6, %c0_7], %7 {strides = array<i32>} : memref<16x96xf32, #tpu.memory_space<vmem>>, vector<16x96xf32>,
    %c0_i32_8 = arith.constant 0 : i32
    %9 = arith.cmpi eq, %arg2, %c0_i32_8 : i32
    %10 = arith.extui %9 : i1 to i32
    %c0_i32_9 = arith.constant 0 : i32
    %11 = arith.cmpi ne, %10, %c0_i32_9 : i32
    scf.if %11 {
      %c0_10 = arith.constant 0 : index
      %c0_11 = arith.constant 0 : index
      %12 = vector.load %arg6[%c0_10, %c0_11] : memref<16x96xf32, #tpu.memory_space<vmem>>, vector<16x96xf32>
      %c0_12 = arith.constant 0 : index
      %c0_13 = arith.constant 0 : index
      %13 = vector.load %arg5[%c0_12, %c0_13] : memref<16x96xf32, #tpu.memory_space<vmem>>, vector<16x96xf32>
      tpu.vector_store %arg5[%c0_12, %c0_13], %12 {strides = array<i32>} : memref<16x96xf32, #tpu.memory_space<vmem>>, vector<16x96xf32>,
    } else {
    }
    return
  }
  func.func @transform_0(%arg0: i32, %arg1: i32, %arg2: i32) -> (i32, i32) {
    %c0_i32 = arith.constant 0 : i32
    return %arg0, %arg2 : i32, i32
  }
  func.func @transform_1(%arg0: i32, %arg1: i32, %arg2: i32) -> (i32, i32) {
    %c0_i32 = arith.constant 0 : i32
    return %arg1, %arg2 : i32, i32
  }
  func.func @transform_2(%arg0: i32, %arg1: i32, %arg2: i32) -> (i32, i32) {
    %c0_i32 = arith.constant 0 : i32
    return %arg0, %arg1 : i32, i32
  }
}

</mosaic_0001>

<llo_original>
// kernel: tpu_custom_call.1
$region0: #{tpu_custom_call.1}
  #allocation0 [shape = 'u32[]', space=smem, size = 0x4, offset = 0x4, fixed_abs, tag = 'smem constant byte address 0x4 - core index']
  #allocation1 [shape = 'u32[72,128]{1,0:T(1,128)}', space=vmem, size = 0x9000, scoped, tag = 'internal scratch']
  #allocation2 [shape = 'f32[16,96]{1,0:T(8,128)}', space=vmem, size = 0x2000, scoped, tag = 'scratch operand']
  %s0 = inlined_call_operand.vmem [shape: f32[16,32], index: 0, kind: input, shape index: {}]
  %s1 = inlined_call_operand.vmem [shape: f32[96,32], index: 1, kind: input, shape index: {}]
  %s2 = inlined_call_operand.hbm [shape: f32[16,96], index: 2, kind: output, shape index: {}]
  %s3 = sld [smem:[#allocation0]]
  $region26: #{tpu_custom_call.1} parent=0
    _
  %s5 = ssub.s32 1, %s3
  %s6 = scalar_select 0, %s5, %s3
  $region1: #{tpu_custom_call.1} parent=0
    #allocation3 [shape = 'u8[8192]{0}', space=vmem, size = 0x2000, scoped, tag = 'output window, operand 0, single buffered']
    #allocation4 [shape = 's32[1]{0}', space=sflag, size = 0x4, scoped, tag = 'scoped memory for tpu_custom_call.1']
    %7 = vsyncpa [#allocation4], 0
    // Predicated region
    $region2: #{tpu_custom_call.1} parent=1 // pred_check
      _
    $region3: #{tpu_custom_call.1} parent=1 // pred_check_branch
      %9 = sbr.rel (0) target = $region5
    $region4: #{tpu_custom_call.1} parent=1 // pred_region
      _
    $region5: #{tpu_custom_call.1} parent=1 // pred_fallthru
      _
    // Predicated region
    $region6: #{tpu_custom_call.1} parent=1 // pred_check
      _
    $region7: #{tpu_custom_call.1} parent=1 // pred_check_branch
      %11 = sbr.rel (0) target = $region9
    $region8: #{tpu_custom_call.1} parent=1 // pred_region
      _
    $region9: #{tpu_custom_call.1} parent=1 // pred_fallthru
      _
    %p12 = scmp.eq.s32.totalorder 0, 0
    // Predicated region
    $region10: #{tpu_custom_call.1} parent=1 // pred_check
      %p13 = pneg %p12
    $region11: #{tpu_custom_call.1} parent=1 // pred_check_branch
      %15 = sbr.rel (%p13) target = $region13
    $region12: #{tpu_custom_call.1} parent=1 // pred_region
      %vm16 = vcmask 785408
      %17 = vst.msk [vmem:[#allocation2] sm:$0xff] %vm16, 0.0
      %18 = vst.msk [vmem:[#allocation2 + $0x8] sm:$0xff] %vm16, 0.0
    $region13: #{tpu_custom_call.1} parent=1 // pred_fallthru
      _
    %v19 = vld [vmem:[#allocation2] sm:$0xff]
    %v20 = vld [vmem:[#allocation2 + $0x8] sm:$0xff]
    %v21 = vld [vmem:[%s0] sm:$0xff]
    %v22 = vld [vmem:[%s0 + $0x8] sm:$0xff]
    %v23 = vld [vmem:[%s1] sm:$0xff]
    %v24 = vld [vmem:[%s1 + $0x8] sm:$0xff]
    %v25 = vld [vmem:[%s1 + $0x10] sm:$0xff]
    %v26 = vld [vmem:[%s1 + $0x18] sm:$0xff]
    %v27 = vld [vmem:[%s1 + $0x20] sm:$0xff]
    %v28 = vld [vmem:[%s1 + $0x28] sm:$0xff]
    %v29 = vld [vmem:[%s1 + $0x30] sm:$0xff]
    %v30 = vld [vmem:[%s1 + $0x38] sm:$0xff]
    %v31 = vld [vmem:[%s1 + $0x40] sm:$0xff]
    %v32 = vld [vmem:[%s1 + $0x48] sm:$0xff]
    %v33 = vld [vmem:[%s1 + $0x50] sm:$0xff]
    %v34 = vld [vmem:[%s1 + $0x58] sm:$0xff]
    %vm35 = vcmask 261120
    %v37 = vsel %vm35, %v21, 0
    %v40 = vsel %vm35, %v22, 0
    %v43 = vsel %vm35, %v23, 0
    %v46 = vsel %vm35, %v24, 0
    %v49 = vsel %vm35, %v25, 0
    %v52 = vsel %vm35, %v26, 0
    %v55 = vsel %vm35, %v27, 0
    %v58 = vsel %vm35, %v28, 0
    %v61 = vsel %vm35, %v29, 0
    %v64 = vsel %vm35, %v30, 0
    %v67 = vsel %vm35, %v31, 0
    %v70 = vsel %vm35, %v32, 0
    %v73 = vsel %vm35, %v33, 0
    %v76 = vsel %vm35, %v34, 0
    %78 = vmatpush.xpose.msra.mxu0 0.0
    %79 = vmatpush.xpose.msra.mxu0 0.0
    %80 = vmatpush.xpose.msra.mxu0 0.0
    %81 = vmatpush.xpose.msra.mxu0 0.0
    %82 = vmatpush.xpose.msra.mxu0 %v76
    %83 = vmatpush.xpose.msra.mxu0 %v73
    %84 = vmatpush.xpose.msra.mxu0 %v70
    %85 = vmatpush.xpose.msra.mxu0 %v67
    %86 = vmatpush.xpose.msra.mxu0 %v64
    %87 = vmatpush.xpose.msra.mxu0 %v61
    %88 = vmatpush.xpose.msra.mxu0 %v58
    %89 = vmatpush.xpose.msra.mxu0 %v55
    %90 = vmatpush.xpose.msra.mxu0 %v52
    %91 = vmatpush.xpose.msra.mxu0 %v49
    %92 = vmatpush.xpose.msra.mxu0 %v46
    %93 = vmatpush.xpose.msra.mxu0 %v43
    %94 = vmatmul.f32.gmra.mxu0 %v37
    %v95 = vpop.f32.mrf.mxu0
    %v96 = vadd.f32 0.0, %v95
    %97 = vmatmul.f32.gmra.mxu0 %v40
    %v98 = vpop.f32.mrf.mxu0
    %v99 = vadd.f32 0.0, %v98
    %100 = vdwg.mxu0
    %v101 = vadd.f32 %v19, %v96
    %v102 = vadd.f32 %v20, %v99
    %vm103 = vcmask 785408
    %104 = vst.msk [vmem:[#allocation2] sm:$0xff] %vm103, %v101
    %105 = vst.msk [vmem:[#allocation2 + $0x8] sm:$0xff] %vm103, %v102
    // Predicated region
    $region14: #{tpu_custom_call.1} parent=1 // pred_check
      %p106 = pneg %p12
    $region15: #{tpu_custom_call.1} parent=1 // pred_check_branch
      %108 = sbr.rel (%p106) target = $region17
    $region16: #{tpu_custom_call.1} parent=1 // pred_region
      %v109 = vld [vmem:[#allocation2] sm:$0xff]
      %v110 = vld [vmem:[#allocation2 + $0x8] sm:$0xff]
      %111 = vst.msk [vmem:[#allocation3] sm:$0xff] %vm103, %v109
      %112 = vst.msk [vmem:[#allocation3 + $0x8] sm:$0xff] %vm103, %v110
    $region17: #{tpu_custom_call.1} parent=1 // pred_fallthru
      _
    // Predicated region
    $region18: #{tpu_custom_call.1} parent=1 // pred_check
      _
    $region19: #{tpu_custom_call.1} parent=1 // pred_check_branch
      %114 = sbr.rel (0) target = $region21
    $region20: #{tpu_custom_call.1} parent=1 // pred_region
      %116 = vsyncadd [#allocation4], 0
      %s117 = sshll.u32 [#allocation3], 4
      %s118 = int_to_ptr.vmem [resolvable:$true] %s117
      %s119 = sshll.u32 %s2, 4
      %s120 = int_to_ptr.hbm [resolvable:$true] %s119
      %125 = dma.vmem_to_hbm [thread:$0]  %s118, 256, %s120, [#allocation4], 128, 128, 8
    $region21: #{tpu_custom_call.1} parent=1 // pred_fallthru
      _
    // Predicated region
    $region22: #{tpu_custom_call.1} parent=1 // pred_check
      _
    $region23: #{tpu_custom_call.1} parent=1 // pred_check_branch
      %127 = sbr.rel (0) target = $region25
    $region24: #{tpu_custom_call.1} parent=1 // pred_region
      %129 = dma.done [#allocation4], 256
    $region25: #{tpu_custom_call.1} parent=1 // pred_fallthru
      _
    %130 = vsyncpa [#allocation4], 1

</llo_original>
